<compile_context>
chip_gen: v7x
topology: tpu7x:2x2x1
jax: 0.10.0
libtpu: 0.0.40
codegen_flags: <defaults>
</compile_context>

<pallas_src>
import jax
import jax.numpy as jnp
from jax.experimental import pallas as pl
from jax.experimental.pallas import tpu as pltpu


def affine_coupling_kernel(z1_ref, z2_ref, w1_ref, b1_ref, w2_ref, b2_ref,
                           w3s_ref, b3s_ref, w3t_ref, b3t_ref,
                           y2_ref, logdet_ref, h_ref):
    z1 = z1_ref[...]                                     # (TB, C/2) f32

    # net: Linear -> ReLU -> Linear -> ReLU -> (split) Linear   (Scale folded)
    # TODO(synk): cast dot operands to bf16 on v6e/v7x for MXU headroom if
    # hidden / C grow; kept f32 here to match the PyTorch module numerics.
    h_ref[...] = jnp.maximum(
        jnp.dot(z1, w1_ref[...], preferred_element_type=jnp.float32)
        + b1_ref[...], 0.0)
    h_ref[...] = jnp.maximum(
        jnp.dot(h_ref[...], w2_ref[...], preferred_element_type=jnp.float32)
        + b2_ref[...], 0.0)
    h = h_ref[...]

    log_s = jnp.dot(h, w3s_ref[...], preferred_element_type=jnp.float32) + b3s_ref[...]
    t = jnp.dot(h, w3t_ref[...], preferred_element_type=jnp.float32) + b3t_ref[...]

    zlog = log_s + 2.0
    s = jax.nn.sigmoid(zlog)                             # (TB, C/2)

    # y2 = (z2 + t) * s   (lane-dense, unmasked store; z1 never re-written)
    y2_ref[...] = ((z2_ref[...] + t) * s).astype(y2_ref.dtype)

    # log(sigmoid(z)) computed stably: min(z, 0) - log(1 + exp(-|z|))
    log_sig = jnp.minimum(zlog, 0.0) - jnp.log(1.0 + jnp.exp(-jnp.abs(zlog)))
    logdet_ref[...] = jnp.sum(log_sig, axis=1, keepdims=True)


def _choose_batch_tile(B, half, hidden):
    """Largest batch tile (multiple of 8 f32 sublanes) whose double-buffered
    tiles stay well inside VMEM. Budget is conservative so the same tile is
    safe on v7x (64 MiB/TC) as well as v5e/v6e (128 MiB)."""
    bytes_per_row = 4 * (2 * half       # z1 + z2 input tiles
                         + half + 1     # y2 + logdet output tiles
                         + hidden)      # h scratch
    budget = 8 * 1024 * 1024            # tiles only; leaves headroom for weights
    cap = max(8, (budget // (2 * bytes_per_row)) // 8 * 8)
    cap = min(cap, 2048)
    return B if B <= cap else cap


def affine_coupling_forward(x, params, *, tile_b=None):
    """x: (B, in_ch) float32. Returns (y: (B, in_ch), logdet: (B,))."""
    w1, b1, w2, b2, w3, b3, scale = params
    B, C = x.shape
    assert C % 2 == 0, "in_ch must be even for the coupling split"
    half = C // 2
    hidden = w1.shape[1]

    # Fold the Scale module (out = x * exp(3*scale)) into the last Linear.
    gain = jnp.exp(scale * 3.0)                  # (1, C)
    w3g = w3 * gain
    b3g = b3 * gain
    # Split the last Linear into lane-dense log_s / t heads.
    w3s, w3t = w3g[:, :half], w3g[:, half:]
    b3s, b3t = b3g[:, :half], b3g[:, half:]

    # Lane-dense channel split of the input, done once in the wrapper.
    z1 = x[:, :half]
    z2 = x[:, half:]

    tb = tile_b if tile_b is not None else _choose_batch_tile(B, half, hidden)
    grid = (pl.cdiv(B, tb),)

    batch_spec = lambda i: (i, 0)   # tiles march along the batch axis
    const_spec = lambda i: (0, 0)   # weights/biases: same block every step

    y2, logdet = pl.pallas_call(
        affine_coupling_kernel,
        out_shape=(
            jax.ShapeDtypeStruct((B, half), x.dtype),
            jax.ShapeDtypeStruct((B, 1), jnp.float32),
        ),
        grid_spec=pltpu.PrefetchScalarGridSpec(
            num_scalar_prefetch=0,
            grid=grid,
            in_specs=[
                pl.BlockSpec((tb, half), batch_spec),        # z1
                pl.BlockSpec((tb, half), batch_spec),        # z2
                pl.BlockSpec((half, hidden), const_spec),    # w1
                pl.BlockSpec((1, hidden), const_spec),       # b1
                pl.BlockSpec((hidden, hidden), const_spec),  # w2
                pl.BlockSpec((1, hidden), const_spec),       # b2
                pl.BlockSpec((hidden, half), const_spec),    # w3s (log_s head)
                pl.BlockSpec((1, half), const_spec),         # b3s
                pl.BlockSpec((hidden, half), const_spec),    # w3t (t head)
                pl.BlockSpec((1, half), const_spec),         # b3t
            ],
            out_specs=[
                pl.BlockSpec((tb, half), batch_spec),        # y2
                pl.BlockSpec((tb, 1), batch_spec),           # logdet
            ],
            scratch_shapes=[pltpu.VMEM((tb, hidden), jnp.float32)],
        ),
        compiler_params=pltpu.CompilerParams(
            dimension_semantics=("parallel",),
        ),
    )(z1, z2, w1, b1, w2, b2, w3s, b3s, w3t, b3t)

    # Pass-through half is never touched by the kernel; assemble y here.
    y = jnp.concatenate([z1, y2], axis=1)
    return y, logdet[:, 0]


def make_params(key, in_ch, hidden):
    """Deterministic synthetic parameters.
    Linear weights stored in (in, out) layout (i.e. transposed PyTorch weight)."""
    half = in_ch // 2
    ks = jax.random.split(key, 7)
    w1 = jax.random.normal(ks[0], (half, hidden), jnp.float32) * 0.1
    b1 = jax.random.normal(ks[1], (1, hidden), jnp.float32) * 0.1
    w2 = jax.random.normal(ks[2], (hidden, hidden), jnp.float32) * 0.1
    b2 = jax.random.normal(ks[3], (1, hidden), jnp.float32) * 0.1
    w3 = jax.random.normal(ks[4], (hidden, in_ch), jnp.float32) * 0.1
    b3 = jax.random.normal(ks[5], (1, in_ch), jnp.float32) * 0.1
    # Scale.scale is zero-initialized in the module; keep a tiny nonzero
    # deterministic value so the Scale path is exercised.
    scale = jax.random.normal(ks[6], (1, in_ch), jnp.float32) * 0.05
    return (w1, b1, w2, b2, w3, b3, scale)


def reference_forward(x, params):
    """Pure-JAX reference faithful to the PyTorch AffineCoupling.forward."""
    w1, b1, w2, b2, w3, b3, scale = params
    half = x.shape[1] // 2
    z1, z2 = x[:, :half], x[:, half:]
    h = jnp.maximum(z1 @ w1 + b1, 0.0)
    h = jnp.maximum(h @ w2 + b2, 0.0)
    h = (h @ w3 + b3) * jnp.exp(scale * 3.0)
    log_s, t = h[:, :half], h[:, half:]
    s = jax.nn.sigmoid(log_s + 2.0)
    y = jnp.concatenate([z1, (z2 + t) * s], axis=1)
    logdet = jnp.sum(jnp.log(s), axis=1)
    return y, logdet


if __name__ == "__main__":
    B, in_ch, hidden = 24, 16, 32
    key = jax.random.PRNGKey(0)
    kx, kp = jax.random.split(key)
    x = jax.random.normal(kx, (B, in_ch), jnp.float32)
    params = make_params(kp, in_ch, hidden)

    # tile_b=8 -> grid of 3 batch tiles, exercising the pipelined grid path.
    y, logdet = affine_coupling_forward(x, params, tile_b=8)
    jax.block_until_ready((y, logdet))

    y_ref, logdet_ref = reference_forward(x, params)
    assert jnp.allclose(y, y_ref, atol=1e-5, rtol=1e-5)
    assert jnp.allclose(logdet, logdet_ref, atol=1e-5, rtol=1e-5)

    # Also exercise the auto tile-size path (single tile covers the batch).
    y2_, logdet2_ = affine_coupling_forward(x, params)
    jax.block_until_ready((y2_, logdet2_))
    assert jnp.allclose(y2_, y_ref, atol=1e-5, rtol=1e-5)
    assert jnp.allclose(logdet2_, logdet_ref, atol=1e-5, rtol=1e-5)

    print("KERNEL_OK")
</pallas_src>

<mosaic_0001>
module attributes {stable_mosaic.version = 11 : i64} {
  func.func @affine_coupling_kernel(%arg0: i32, %arg1: memref<8x8xf32, #tpu.memory_space<vmem>>, %arg2: memref<8x8xf32, #tpu.memory_space<vmem>>, %arg3: memref<8x32xf32, #tpu.memory_space<vmem>>, %arg4: memref<1x32xf32, #tpu.memory_space<vmem>>, %arg5: memref<32x32xf32, #tpu.memory_space<vmem>>, %arg6: memref<1x32xf32, #tpu.memory_space<vmem>>, %arg7: memref<32x8xf32, #tpu.memory_space<vmem>>, %arg8: memref<1x8xf32, #tpu.memory_space<vmem>>, %arg9: memref<32x8xf32, #tpu.memory_space<vmem>>, %arg10: memref<1x8xf32, #tpu.memory_space<vmem>>, %arg11: memref<8x8xf32, #tpu.memory_space<vmem>>, %arg12: memref<8x1xf32, #tpu.memory_space<vmem>>, %arg13: memref<8x32xf32, #tpu.memory_space<vmem>>) attributes {dimension_semantics = [#tpu.dimension_semantics<parallel>], iteration_bounds = array<i64: 3>, scalar_prefetch = 0 : i64, scratch_operands = 1 : i64, tpu.core_type = #tpu.core_type<tc>, window_params = [{transform_indices = @transform_0, window_bounds = array<i64: 8, 8>}, {transform_indices = @transform_1, window_bounds = array<i64: 8, 8>}, {pipeline_mode = #tpu.pipeline_mode<synchronous>, transform_indices = @transform_2, window_bounds = array<i64: 8, 32>}, {pipeline_mode = #tpu.pipeline_mode<synchronous>, transform_indices = @transform_3, window_bounds = array<i64: 1, 32>}, {pipeline_mode = #tpu.pipeline_mode<synchronous>, transform_indices = @transform_4, window_bounds = array<i64: 32, 32>}, {pipeline_mode = #tpu.pipeline_mode<synchronous>, transform_indices = @transform_5, window_bounds = array<i64: 1, 32>}, {pipeline_mode = #tpu.pipeline_mode<synchronous>, transform_indices = @transform_6, window_bounds = array<i64: 32, 8>}, {pipeline_mode = #tpu.pipeline_mode<synchronous>, transform_indices = @transform_7, window_bounds = array<i64: 1, 8>}, {pipeline_mode = #tpu.pipeline_mode<synchronous>, transform_indices = @transform_8, window_bounds = array<i64: 32, 8>}, {pipeline_mode = #tpu.pipeline_mode<synchronous>, transform_indices = @transform_9, window_bounds = array<i64: 1, 8>}, {transform_indices = @transform_10, window_bounds = array<i64: 8, 8>}, {transform_indices = @transform_11, window_bounds = array<i64: 8, 1>}]} {
    %c0 = arith.constant 0 : index
    %c0_0 = arith.constant 0 : index
    %0 = vector.load %arg1[%c0, %c0_0] : memref<8x8xf32, #tpu.memory_space<vmem>>, vector<8x8xf32>
    %c0_1 = arith.constant 0 : index
    %c0_2 = arith.constant 0 : index
    %1 = vector.load %arg3[%c0_1, %c0_2] : memref<8x32xf32, #tpu.memory_space<vmem>>, vector<8x32xf32>
    %cst = arith.constant dense<0.000000e+00> : vector<8x32xf32>
    %2 = tpu.matmul %0, %1, %cst {dimension_numbers = #tpu.dot_dimension_numbers<[1], [0], [0], [1], [0, 0, 1, 1], [], []>} : vector<8x8xf32>, vector<8x32xf32>, vector<8x32xf32> -> vector<8x32xf32>
    %c0_3 = arith.constant 0 : index
    %c0_4 = arith.constant 0 : index
    %3 = vector.load %arg4[%c0_3, %c0_4] : memref<1x32xf32, #tpu.memory_space<vmem>>, vector<1x32xf32>
    %4 = vector.broadcast %3 : vector<1x32xf32> to vector<8x32xf32>
    %5 = arith.addf %2, %4 : vector<8x32xf32>
    %cst_5 = arith.constant 0.000000e+00 : f32
    %6 = vector.broadcast %cst_5 : f32 to vector<8x32xf32>
    %7 = arith.maximumf %5, %6 : vector<8x32xf32>
    %c0_6 = arith.constant 0 : index
    %c0_7 = arith.constant 0 : index
    %8 = vector.load %arg13[%c0_6, %c0_7] : memref<8x32xf32, #tpu.memory_space<vmem>>, vector<8x32xf32>
    tpu.vector_store %arg13[%c0_6, %c0_7], %7 {strides = array<i32>} : memref<8x32xf32, #tpu.memory_space<vmem>>, vector<8x32xf32>,
    %c0_8 = arith.constant 0 : index
    %c0_9 = arith.constant 0 : index
    %9 = vector.load %arg13[%c0_8, %c0_9] : memref<8x32xf32, #tpu.memory_space<vmem>>, vector<8x32xf32>
    %c0_10 = arith.constant 0 : index
    %c0_11 = arith.constant 0 : index
    %10 = vector.load %arg5[%c0_10, %c0_11] : memref<32x32xf32, #tpu.memory_space<vmem>>, vector<32x32xf32>
    %cst_12 = arith.constant dense<0.000000e+00> : vector<8x32xf32>
    %11 = tpu.matmul %9, %10, %cst_12 {dimension_numbers = #tpu.dot_dimension_numbers<[1], [0], [0], [1], [0, 0, 1, 1], [], []>} : vector<8x32xf32>, vector<32x32xf32>, vector<8x32xf32> -> vector<8x32xf32>
    %c0_13 = arith.constant 0 : index
    %c0_14 = arith.constant 0 : index
    %12 = vector.load %arg6[%c0_13, %c0_14] : memref<1x32xf32, #tpu.memory_space<vmem>>, vector<1x32xf32>
    %13 = vector.broadcast %12 : vector<1x32xf32> to vector<8x32xf32>
    %14 = arith.addf %11, %13 : vector<8x32xf32>
    %cst_15 = arith.constant 0.000000e+00 : f32
    %15 = vector.broadcast %cst_15 : f32 to vector<8x32xf32>
    %16 = arith.maximumf %14, %15 : vector<8x32xf32>
    %c0_16 = arith.constant 0 : index
    %c0_17 = arith.constant 0 : index
    %17 = vector.load %arg13[%c0_16, %c0_17] : memref<8x32xf32, #tpu.memory_space<vmem>>, vector<8x32xf32>
    tpu.vector_store %arg13[%c0_16, %c0_17], %16 {strides = array<i32>} : memref<8x32xf32, #tpu.memory_space<vmem>>, vector<8x32xf32>,
    %c0_18 = arith.constant 0 : index
    %c0_19 = arith.constant 0 : index
    %18 = vector.load %arg13[%c0_18, %c0_19] : memref<8x32xf32, #tpu.memory_space<vmem>>, vector<8x32xf32>
    %c0_20 = arith.constant 0 : index
    %c0_21 = arith.constant 0 : index
    %19 = vector.load %arg7[%c0_20, %c0_21] : memref<32x8xf32, #tpu.memory_space<vmem>>, vector<32x8xf32>
    %cst_22 = arith.constant dense<0.000000e+00> : vector<8x8xf32>
    %20 = tpu.matmul %18, %19, %cst_22 {dimension_numbers = #tpu.dot_dimension_numbers<[1], [0], [0], [1], [0, 0, 1, 1], [], []>} : vector<8x32xf32>, vector<32x8xf32>, vector<8x8xf32> -> vector<8x8xf32>
    %c0_23 = arith.constant 0 : index
    %c0_24 = arith.constant 0 : index
    %21 = vector.load %arg8[%c0_23, %c0_24] : memref<1x8xf32, #tpu.memory_space<vmem>>, vector<1x8xf32>
    %22 = vector.broadcast %21 : vector<1x8xf32> to vector<8x8xf32>
    %23 = arith.addf %20, %22 : vector<8x8xf32>
    %c0_25 = arith.constant 0 : index
    %c0_26 = arith.constant 0 : index
    %24 = vector.load %arg9[%c0_25, %c0_26] : memref<32x8xf32, #tpu.memory_space<vmem>>, vector<32x8xf32>
    %cst_27 = arith.constant dense<0.000000e+00> : vector<8x8xf32>
    %25 = tpu.matmul %18, %24, %cst_27 {dimension_numbers = #tpu.dot_dimension_numbers<[1], [0], [0], [1], [0, 0, 1, 1], [], []>} : vector<8x32xf32>, vector<32x8xf32>, vector<8x8xf32> -> vector<8x8xf32>
    %c0_28 = arith.constant 0 : index
    %c0_29 = arith.constant 0 : index
    %26 = vector.load %arg10[%c0_28, %c0_29] : memref<1x8xf32, #tpu.memory_space<vmem>>, vector<1x8xf32>
    %27 = vector.broadcast %26 : vector<1x8xf32> to vector<8x8xf32>
    %28 = arith.addf %25, %27 : vector<8x8xf32>
    %cst_30 = arith.constant 2.000000e+00 : f32
    %29 = vector.broadcast %cst_30 : f32 to vector<8x8xf32>
    %30 = arith.addf %23, %29 : vector<8x8xf32>
    %31 = arith.negf %30 : vector<8x8xf32>
    %32 = math.exp %31 : vector<8x8xf32>
    %cst_31 = arith.constant 1.000000e+00 : f32
    %33 = vector.broadcast %cst_31 : f32 to vector<8x8xf32>
    %34 = arith.addf %33, %32 : vector<8x8xf32>
    %35 = arith.divf %33, %34 : vector<8x8xf32>
    %c0_32 = arith.constant 0 : index
    %c0_33 = arith.constant 0 : index
    %36 = vector.load %arg2[%c0_32, %c0_33] : memref<8x8xf32, #tpu.memory_space<vmem>>, vector<8x8xf32>
    %37 = arith.addf %36, %28 : vector<8x8xf32>
    %38 = arith.mulf %37, %35 : vector<8x8xf32>
    %c0_34 = arith.constant 0 : index
    %c0_35 = arith.constant 0 : index
    %39 = vector.load %arg11[%c0_34, %c0_35] : memref<8x8xf32, #tpu.memory_space<vmem>>, vector<8x8xf32>
    tpu.vector_store %arg11[%c0_34, %c0_35], %38 {strides = array<i32>} : memref<8x8xf32, #tpu.memory_space<vmem>>, vector<8x8xf32>,
    %cst_36 = arith.constant 0.000000e+00 : f32
    %40 = vector.broadcast %cst_36 : f32 to vector<8x8xf32>
    %41 = arith.minimumf %30, %40 : vector<8x8xf32>
    %42 = math.absf %30 : vector<8x8xf32>
    %cst_37 = arith.constant 0.000000e+00 : f32
    %43 = vector.broadcast %cst_37 : f32 to vector<8x8xf32>
    %44 = arith.subf %43, %42 : vector<8x8xf32>
    %45 = math.exp %44 : vector<8x8xf32>
    %cst_38 = arith.constant 1.000000e+00 : f32
    %46 = vector.broadcast %cst_38 : f32 to vector<8x8xf32>
    %47 = arith.addf %46, %45 : vector<8x8xf32>
    %48 = math.log %47 : vector<8x8xf32>
    %49 = arith.subf %41, %48 : vector<8x8xf32>
    %cst_39 = arith.constant dense<0.000000e+00> : vector<8xf32>
    %50 = vector.multi_reduction <add>, %49, %cst_39 [1] : vector<8x8xf32> to vector<8xf32>
    %51 = vector.shape_cast %50 : vector<8xf32> to vector<8x1xf32>
    %c0_40 = arith.constant 0 : index
    %c0_41 = arith.constant 0 : index
    %52 = vector.load %arg12[%c0_40, %c0_41] : memref<8x1xf32, #tpu.memory_space<vmem>>, vector<8x1xf32>
    tpu.vector_store %arg12[%c0_40, %c0_41], %51 {strides = array<i32>} : memref<8x1xf32, #tpu.memory_space<vmem>>, vector<8x1xf32>,
    return
  }
  func.func @transform_0(%arg0: i32) -> (i32, i32) {
    %c0_i32 = arith.constant 0 : i32
    %c0_i32_0 = arith.constant 0 : i32
    return %arg0, %c0_i32 : i32, i32
  }
  func.func @transform_1(%arg0: i32) -> (i32, i32) {
    %c0_i32 = arith.constant 0 : i32
    %c0_i32_0 = arith.constant 0 : i32
    return %arg0, %c0_i32 : i32, i32
  }
  func.func @transform_2(%arg0: i32) -> (i32, i32) {
    %c0_i32 = arith.constant 0 : i32
    %c0_i32_0 = arith.constant 0 : i32
    %c0_i32_1 = arith.constant 0 : i32
    return %c0_i32, %c0_i32_0 : i32, i32
  }
  func.func @transform_3(%arg0: i32) -> (i32, i32) {
    %c0_i32 = arith.constant 0 : i32
    %c0_i32_0 = arith.constant 0 : i32
    %c0_i32_1 = arith.constant 0 : i32
    return %c0_i32, %c0_i32_0 : i32, i32
  }
  func.func @transform_4(%arg0: i32) -> (i32, i32) {
    %c0_i32 = arith.constant 0 : i32
    %c0_i32_0 = arith.constant 0 : i32
    %c0_i32_1 = arith.constant 0 : i32
    return %c0_i32, %c0_i32_0 : i32, i32
  }
  func.func @transform_5(%arg0: i32) -> (i32, i32) {
    %c0_i32 = arith.constant 0 : i32
    %c0_i32_0 = arith.constant 0 : i32
    %c0_i32_1 = arith.constant 0 : i32
    return %c0_i32, %c0_i32_0 : i32, i32
  }
  func.func @transform_6(%arg0: i32) -> (i32, i32) {
    %c0_i32 = arith.constant 0 : i32
    %c0_i32_0 = arith.constant 0 : i32
    %c0_i32_1 = arith.constant 0 : i32
    return %c0_i32, %c0_i32_0 : i32, i32
  }
  func.func @transform_7(%arg0: i32) -> (i32, i32) {
    %c0_i32 = arith.constant 0 : i32
    %c0_i32_0 = arith.constant 0 : i32
    %c0_i32_1 = arith.constant 0 : i32
    return %c0_i32, %c0_i32_0 : i32, i32
  }
  func.func @transform_8(%arg0: i32) -> (i32, i32) {
    %c0_i32 = arith.constant 0 : i32
    %c0_i32_0 = arith.constant 0 : i32
    %c0_i32_1 = arith.constant 0 : i32
    return %c0_i32, %c0_i32_0 : i32, i32
  }
  func.func @transform_9(%arg0: i32) -> (i32, i32) {
    %c0_i32 = arith.constant 0 : i32
    %c0_i32_0 = arith.constant 0 : i32
    %c0_i32_1 = arith.constant 0 : i32
    return %c0_i32, %c0_i32_0 : i32, i32
  }
  func.func @transform_10(%arg0: i32) -> (i32, i32) {
    %c0_i32 = arith.constant 0 : i32
    %c0_i32_0 = arith.constant 0 : i32
    return %arg0, %c0_i32 : i32, i32
  }
  func.func @transform_11(%arg0: i32) -> (i32, i32) {
    %c0_i32 = arith.constant 0 : i32
    %c0_i32_0 = arith.constant 0 : i32
    return %arg0, %c0_i32 : i32, i32
  }
}

</mosaic_0001>

<llo_original>
// kernel: tpu_custom_call.1
$region0: #{tpu_custom_call.1}
  #allocation0 [shape = 'u32[]', space=smem, size = 0x4, offset = 0x4, fixed_abs, tag = 'smem constant byte address 0x4 - core index']
  #allocation1 [shape = 'u32[144,128]{1,0:T(1,128)}', space=vmem, size = 0x12000, scoped, tag = 'internal scratch']
  #allocation2 [shape = 'f32[8,32]{1,0:T(8,128)}', space=vmem, size = 0x1000, scoped, tag = 'scratch operand']
  %s0 = inlined_call_operand.vmem [shape: f32[24,8], index: 0, kind: input, shape index: {}]
  %s1 = inlined_call_operand.vmem [shape: f32[24,8], index: 1, kind: input, shape index: {}]
  %s2 = inlined_call_operand.vmem [shape: f32[8,32], index: 2, kind: input, shape index: {}]
  %s3 = inlined_call_operand.vmem [shape: f32[1,32], index: 3, kind: input, shape index: {}]
  %s4 = inlined_call_operand.vmem [shape: f32[32,32], index: 4, kind: input, shape index: {}]
  %s5 = inlined_call_operand.vmem [shape: f32[1,32], index: 5, kind: input, shape index: {}]
  %s6 = inlined_call_operand.vmem [shape: f32[32,8], index: 6, kind: input, shape index: {}]
  %s7 = inlined_call_operand.vmem [shape: f32[1,8], index: 7, kind: input, shape index: {}]
  %s8 = inlined_call_operand.vmem [shape: f32[32,8], index: 8, kind: input, shape index: {}]
  %s9 = inlined_call_operand.vmem [shape: f32[1,8], index: 9, kind: input, shape index: {}]
  %s10 = inlined_call_operand.vmem [shape: f32[24,8], index: 10, kind: output, shape index: {0}]
  %s11 = inlined_call_operand.vmem [shape: f32[24,1], index: 11, kind: output, shape index: {1}]
  %12 = xla_tuple %s10, %s11
  %s13 = sld [smem:[#allocation0]]
  $region81: #{tpu_custom_call.1} parent=0
    _
  %s15 = ssub.s32 1, %s13
  %s16 = scalar_select 0, %s15, %s13
  loop: start=0, step=1, limit=5
  $region2: #{tpu_custom_call.1} parent=0 // loop_pre_header
    _
  $region3: #{tpu_custom_call.1} parent=0 // loop_header
    %s18 = sphi 0, %s22
    %p19 = scmp.ge.s32.totalorder %s18, 5
    %s28 = sphi 0, %s30
    %s31 = sphi 0, %s28
    %s32 = sphi 0, %s31
    %s48 = sphi 0, %s32
    %s54 = sphi 0, %s56
    %s57 = sphi 0, %s54
    %s58 = sphi 0, %s57
    %s74 = sphi 0, %s58
    %s78 = sphi 0, %s78
    %s80 = sphi 0, %s78
    %s81 = sphi 0, %s80
    %s95 = sphi 0, %s81
    %s99 = sphi 0, %s99
    %s101 = sphi 0, %s99
    %s102 = sphi 0, %s101
    %s116 = sphi 0, %s102
    %s120 = sphi 0, %s120
    %s122 = sphi 0, %s120
    %s123 = sphi 0, %s122
    %s137 = sphi 0, %s123
    %s141 = sphi 0, %s141
    %s143 = sphi 0, %s141
    %s144 = sphi 0, %s143
    %s158 = sphi 0, %s144
    %s162 = sphi 0, %s162
    %s164 = sphi 0, %s162
    %s165 = sphi 0, %s164
    %s179 = sphi 0, %s165
    %s183 = sphi 0, %s183
    %s185 = sphi 0, %s183
    %s186 = sphi 0, %s185
    %s200 = sphi 0, %s186
    %s204 = sphi 0, %s204
    %s206 = sphi 0, %s204
    %s207 = sphi 0, %s206
    %s221 = sphi 0, %s207
    %s225 = sphi 0, %s225
    %s227 = sphi 0, %s225
    %s228 = sphi 0, %s227
    %s242 = sphi 0, %s228
    %s248 = sphi 0, %s250
    %s251 = sphi 0, %s248
    %s252 = sphi 0, %s251
    %s268 = sphi 0, %s252
    %s274 = sphi 0, %s276
    %s277 = sphi 0, %s274
    %s278 = sphi 0, %s277
    %s294 = sphi 0, %s278
  $region4: #{tpu_custom_call.1} parent=0 // loop_header_branch
    %21 = sbr.rel (%p19) target = $region8
  $region5: #{tpu_custom_call.1} parent=0 // loop_body
    %s23 = ssub.s32 %s18, 1
    %s24 = ssub.s32 %s18, 2
    %s25 = sadd.s32 %s18, 1
    %s26 = ssub.s32 %s18, %s25
    %p27 = scmp.eq.s32.totalorder %s26, 0
    %s29 = sadd.s32 %s28, 1
    %s30 = scalar_select %p27, %s28, %s29
    %p33 = pneg %p27
    %p34 = scmp.eq.s32.totalorder %s18, 2
    %p35 = por %p33, %p34
    %p36 = scmp.ne.s32.totalorder %s28, %s31
    %p37 = scmp.eq.s32.totalorder %s18, 0
    %p38 = por %p36, %p37
    %p39 = scmp.ne.s32.totalorder %s28, %s31
    %p40 = scmp.eq.s32.totalorder %s23, 2
    %p41 = por %p39, %p40
    %p42 = scmp.ne.s32.totalorder %s31, %s32
    %p43 = scmp.eq.s32.totalorder %s23, 0
    %p44 = por %p42, %p43
    %p45 = scmp.ne.s32.totalorder %s31, %s32
    %p46 = scmp.eq.s32.totalorder %s24, 2
    %p47 = por %p45, %p46
    %p49 = scmp.ne.s32.totalorder %s32, %s48
    %p50 = scmp.eq.s32.totalorder %s24, 0
    %p51 = por %p49, %p50
    %s52 = ssub.s32 %s18, %s25
    %p53 = scmp.eq.s32.totalorder %s52, 0
    %s55 = sadd.s32 %s54, 1
    %s56 = scalar_select %p53, %s54, %s55
    %p59 = pneg %p53
    %p60 = scmp.eq.s32.totalorder %s18, 2
    %p61 = por %p59, %p60
    %p62 = scmp.ne.s32.totalorder %s54, %s57
    %p63 = scmp.eq.s32.totalorder %s18, 0
    %p64 = por %p62, %p63
    %p65 = scmp.ne.s32.totalorder %s54, %s57
    %p66 = scmp.eq.s32.totalorder %s23, 2
    %p67 = por %p65, %p66
    %p68 = scmp.ne.s32.totalorder %s57, %s58
    %p69 = scmp.eq.s32.totalorder %s23, 0
    %p70 = por %p68, %p69
    %p71 = scmp.ne.s32.totalorder %s57, %s58
    %p72 = scmp.eq.s32.totalorder %s24, 2
    %p73 = por %p71, %p72
    %p75 = scmp.ne.s32.totalorder %s58, %s74
    %p76 = scmp.eq.s32.totalorder %s24, 0
    %p77 = por %p75, %p76
    %s79 = sadd.s32 %s78, 1
    %p82 = scmp.eq.s32.totalorder %s18, 2
    %p83 = scmp.ne.s32.totalorder %s78, %s80
    %p84 = scmp.eq.s32.totalorder %s18, 0
    %p85 = por %p83, %p84
    %p86 = scmp.ne.s32.totalorder %s78, %s80
    %p87 = scmp.eq.s32.totalorder %s23, 2
    %p88 = por %p86, %p87
    %p89 = scmp.ne.s32.totalorder %s80, %s81
    %p90 = scmp.eq.s32.totalorder %s23, 0
    %p91 = por %p89, %p90
    %p92 = scmp.ne.s32.totalorder %s80, %s81
    %p93 = scmp.eq.s32.totalorder %s24, 2
    %p94 = por %p92, %p93
    %p96 = scmp.ne.s32.totalorder %s81, %s95
    %p97 = scmp.eq.s32.totalorder %s24, 0
    %p98 = por %p96, %p97
    %s100 = sadd.s32 %s99, 1
    %p103 = scmp.eq.s32.totalorder %s18, 2
    %p104 = scmp.ne.s32.totalorder %s99, %s101
    %p105 = scmp.eq.s32.totalorder %s18, 0
    %p106 = por %p104, %p105
    %p107 = scmp.ne.s32.totalorder %s99, %s101
    %p108 = scmp.eq.s32.totalorder %s23, 2
    %p109 = por %p107, %p108
    %p110 = scmp.ne.s32.totalorder %s101, %s102
    %p111 = scmp.eq.s32.totalorder %s23, 0
    %p112 = por %p110, %p111
    %p113 = scmp.ne.s32.totalorder %s101, %s102
    %p114 = scmp.eq.s32.totalorder %s24, 2
    %p115 = por %p113, %p114
    %p117 = scmp.ne.s32.totalorder %s102, %s116
    %p118 = scmp.eq.s32.totalorder %s24, 0
    %p119 = por %p117, %p118
    %s121 = sadd.s32 %s120, 1
    %p124 = scmp.eq.s32.totalorder %s18, 2
    %p125 = scmp.ne.s32.totalorder %s120, %s122
    %p126 = scmp.eq.s32.totalorder %s18, 0
    %p127 = por %p125, %p126
    %p128 = scmp.ne.s32.totalorder %s120, %s122
    %p129 = scmp.eq.s32.totalorder %s23, 2
    %p130 = por %p128, %p129
    %p131 = scmp.ne.s32.totalorder %s122, %s123
    %p132 = scmp.eq.s32.totalorder %s23, 0
    %p133 = por %p131, %p132
    %p134 = scmp.ne.s32.totalorder %s122, %s123
    %p135 = scmp.eq.s32.totalorder %s24, 2
    %p136 = por %p134, %p135
    %p138 = scmp.ne.s32.totalorder %s123, %s137
    %p139 = scmp.eq.s32.totalorder %s24, 0
    %p140 = por %p138, %p139
    %s142 = sadd.s32 %s141, 1
    %p145 = scmp.eq.s32.totalorder %s18, 2
    %p146 = scmp.ne.s32.totalorder %s141, %s143
    %p147 = scmp.eq.s32.totalorder %s18, 0
    %p148 = por %p146, %p147
    %p149 = scmp.ne.s32.totalorder %s141, %s143
    %p150 = scmp.eq.s32.totalorder %s23, 2
    %p151 = por %p149, %p150
    %p152 = scmp.ne.s32.totalorder %s143, %s144
    %p153 = scmp.eq.s32.totalorder %s23, 0
    %p154 = por %p152, %p153
    %p155 = scmp.ne.s32.totalorder %s143, %s144
    %p156 = scmp.eq.s32.totalorder %s24, 2
    %p157 = por %p155, %p156
    %p159 = scmp.ne.s32.totalorder %s144, %s158
    %p160 = scmp.eq.s32.totalorder %s24, 0
    %p161 = por %p159, %p160
    %s163 = sadd.s32 %s162, 1
    %p166 = scmp.eq.s32.totalorder %s18, 2
    %p167 = scmp.ne.s32.totalorder %s162, %s164
    %p168 = scmp.eq.s32.totalorder %s18, 0
    %p169 = por %p167, %p168
    %p170 = scmp.ne.s32.totalorder %s162, %s164
    %p171 = scmp.eq.s32.totalorder %s23, 2
    %p172 = por %p170, %p171
    %p173 = scmp.ne.s32.totalorder %s164, %s165
    %p174 = scmp.eq.s32.totalorder %s23, 0
    %p175 = por %p173, %p174
    %p176 = scmp.ne.s32.totalorder %s164, %s165
    %p177 = scmp.eq.s32.totalorder %s24, 2
    %p178 = por %p176, %p177
    %p180 = scmp.ne.s32.totalorder %s165, %s179
    %p181 = scmp.eq.s32.totalorder %s24, 0
    %p182 = por %p180, %p181
    %s184 = sadd.s32 %s183, 1
    %p187 = scmp.eq.s32.totalorder %s18, 2
    %p188 = scmp.ne.s32.totalorder %s183, %s185
    %p189 = scmp.eq.s32.totalorder %s18, 0
    %p190 = por %p188, %p189
    %p191 = scmp.ne.s32.totalorder %s183, %s185
    %p192 = scmp.eq.s32.totalorder %s23, 2
    %p193 = por %p191, %p192
    %p194 = scmp.ne.s32.totalorder %s185, %s186
    %p195 = scmp.eq.s32.totalorder %s23, 0
    %p196 = por %p194, %p195
    %p197 = scmp.ne.s32.totalorder %s185, %s186
    %p198 = scmp.eq.s32.totalorder %s24, 2
    %p199 = por %p197, %p198
    %p201 = scmp.ne.s32.totalorder %s186, %s200
    %p202 = scmp.eq.s32.totalorder %s24, 0
    %p203 = por %p201, %p202
    %s205 = sadd.s32 %s204, 1
    %p208 = scmp.eq.s32.totalorder %s18, 2
    %p209 = scmp.ne.s32.totalorder %s204, %s206
    %p210 = scmp.eq.s32.totalorder %s18, 0
    %p211 = por %p209, %p210
    %p212 = scmp.ne.s32.totalorder %s204, %s206
    %p213 = scmp.eq.s32.totalorder %s23, 2
    %p214 = por %p212, %p213
    %p215 = scmp.ne.s32.totalorder %s206, %s207
    %p216 = scmp.eq.s32.totalorder %s23, 0
    %p217 = por %p215, %p216
    %p218 = scmp.ne.s32.totalorder %s206, %s207
    %p219 = scmp.eq.s32.totalorder %s24, 2
    %p220 = por %p218, %p219
    %p222 = scmp.ne.s32.totalorder %s207, %s221
    %p223 = scmp.eq.s32.totalorder %s24, 0
    %p224 = por %p222, %p223
    %s226 = sadd.s32 %s225, 1
    %p229 = scmp.eq.s32.totalorder %s18, 2
    %p230 = scmp.ne.s32.totalorder %s225, %s227
    %p231 = scmp.eq.s32.totalorder %s18, 0
    %p232 = por %p230, %p231
    %p233 = scmp.ne.s32.totalorder %s225, %s227
    %p234 = scmp.eq.s32.totalorder %s23, 2
    %p235 = por %p233, %p234
    %p236 = scmp.ne.s32.totalorder %s227, %s228
    %p237 = scmp.eq.s32.totalorder %s23, 0
    %p238 = por %p236, %p237
    %p239 = scmp.ne.s32.totalorder %s227, %s228
    %p240 = scmp.eq.s32.totalorder %s24, 2
    %p241 = por %p239, %p240
    %p243 = scmp.ne.s32.totalorder %s228, %s242
    %p244 = scmp.eq.s32.totalorder %s24, 0
    %p245 = por %p243, %p244
    %s246 = ssub.s32 %s18, %s25
    %p247 = scmp.eq.s32.totalorder %s246, 0
    %s249 = sadd.s32 %s248, 1
    %s250 = scalar_select %p247, %s248, %s249
    %p253 = pneg %p247
    %p254 = scmp.eq.s32.totalorder %s18, 2
    %p255 = por %p253, %p254
    %p256 = scmp.ne.s32.totalorder %s248, %s251
    %p257 = scmp.eq.s32.totalorder %s18, 0
    %p258 = por %p256, %p257
    %p259 = scmp.ne.s32.totalorder %s248, %s251
    %p260 = scmp.eq.s32.totalorder %s23, 2
    %p261 = por %p259, %p260
    %p262 = scmp.ne.s32.totalorder %s251, %s252
    %p263 = scmp.eq.s32.totalorder %s23, 0
    %p264 = por %p262, %p263
    %p265 = scmp.ne.s32.totalorder %s251, %s252
    %p266 = scmp.eq.s32.totalorder %s24, 2
    %p267 = por %p265, %p266
    %p269 = scmp.ne.s32.totalorder %s252, %s268
    %p270 = scmp.eq.s32.totalorder %s24, 0
    %p271 = por %p269, %p270
    %s272 = ssub.s32 %s18, %s25
    %p273 = scmp.eq.s32.totalorder %s272, 0
    %s275 = sadd.s32 %s274, 1
    %s276 = scalar_select %p273, %s274, %s275
    %p279 = pneg %p273
    %p280 = scmp.eq.s32.totalorder %s18, 2
    %p281 = por %p279, %p280
    %p282 = scmp.ne.s32.totalorder %s274, %s277
    %p283 = scmp.eq.s32.totalorder %s18, 0
    %p284 = por %p282, %p283
    %p285 = scmp.ne.s32.totalorder %s274, %s277
    %p286 = scmp.eq.s32.totalorder %s23, 2
    %p287 = por %p285, %p286
    %p288 = scmp.ne.s32.totalorder %s277, %s278
    %p289 = scmp.eq.s32.totalorder %s23, 0
    %p290 = por %p288, %p289
    %p291 = scmp.ne.s32.totalorder %s277, %s278
    %p292 = scmp.eq.s32.totalorder %s24, 2
    %p293 = por %p291, %p292
    %p295 = scmp.ne.s32.totalorder %s278, %s294
    %p296 = scmp.eq.s32.totalorder %s24, 0
    %p297 = por %p295, %p296
    %p298 = scmp.le.s32.totalorder 1, %s18
    %p299 = scmp.lt.s32.totalorder %s18, 4
    %p300 = pnand %p298, %p299
    %p301 = pneg %p300
    // Predicated region
    $region9: #{tpu_custom_call.1} parent=5 // pred_check
      _
    $region10: #{tpu_custom_call.1} parent=5 // pred_check_branch
      %303 = sbr.rel (%p300) target = $region12
    $region11: #{tpu_custom_call.1} parent=5 // pred_region
      %s304 = ssub.s32 %s18, 1
      // Predicated region
      $region13: #{tpu_custom_call.1} parent=11 // pred_check
        %p305 = pneg %p91
      $region14: #{tpu_custom_call.1} parent=11 // pred_check_branch
        %307 = sbr.rel (%p305) target = $region16
      $region15: #{tpu_custom_call.1} parent=11 // pred_region
        _
      $region16: #{tpu_custom_call.1} parent=11 // pred_fallthru
        _
      // Predicated region
      $region17: #{tpu_custom_call.1} parent=11 // pred_check
        %p308 = pneg %p112
      $region18: #{tpu_custom_call.1} parent=11 // pred_check_branch
        %310 = sbr.rel (%p308) target = $region20
      $region19: #{tpu_custom_call.1} parent=11 // pred_region
        _
      $region20: #{tpu_custom_call.1} parent=11 // pred_fallthru
        _
      // Predicated region
      $region21: #{tpu_custom_call.1} parent=11 // pred_check
        %p311 = pneg %p133
      $region22: #{tpu_custom_call.1} parent=11 // pred_check_branch
        %313 = sbr.rel (%p311) target = $region24
      $region23: #{tpu_custom_call.1} parent=11 // pred_region
        _
      $region24: #{tpu_custom_call.1} parent=11 // pred_fallthru
        _
      // Predicated region
      $region25: #{tpu_custom_call.1} parent=11 // pred_check
        %p314 = pneg %p154
      $region26: #{tpu_custom_call.1} parent=11 // pred_check_branch
        %316 = sbr.rel (%p314) target = $region28
      $region27: #{tpu_custom_call.1} parent=11 // pred_region
        _
      $region28: #{tpu_custom_call.1} parent=11 // pred_fallthru
        _
      // Predicated region
      $region29: #{tpu_custom_call.1} parent=11 // pred_check
        %p317 = pneg %p175
      $region30: #{tpu_custom_call.1} parent=11 // pred_check_branch
        %319 = sbr.rel (%p317) target = $region32
      $region31: #{tpu_custom_call.1} parent=11 // pred_region
        _
      $region32: #{tpu_custom_call.1} parent=11 // pred_fallthru
        _
      // Predicated region
      $region33: #{tpu_custom_call.1} parent=11 // pred_check
        %p320 = pneg %p196
      $region34: #{tpu_custom_call.1} parent=11 // pred_check_branch
        %322 = sbr.rel (%p320) target = $region36
      $region35: #{tpu_custom_call.1} parent=11 // pred_region
        _
      $region36: #{tpu_custom_call.1} parent=11 // pred_fallthru
        _
      // Predicated region
      $region37: #{tpu_custom_call.1} parent=11 // pred_check
        %p323 = pneg %p217
      $region38: #{tpu_custom_call.1} parent=11 // pred_check_branch
        %325 = sbr.rel (%p323) target = $region40
      $region39: #{tpu_custom_call.1} parent=11 // pred_region
        _
      $region40: #{tpu_custom_call.1} parent=11 // pred_fallthru
        _
      // Predicated region
      $region41: #{tpu_custom_call.1} parent=11 // pred_check
        %p326 = pneg %p238
      $region42: #{tpu_custom_call.1} parent=11 // pred_check_branch
        %328 = sbr.rel (%p326) target = $region44
      $region43: #{tpu_custom_call.1} parent=11 // pred_region
        _
      $region44: #{tpu_custom_call.1} parent=11 // pred_fallthru
        _
    $region12: #{tpu_custom_call.1} parent=5 // pred_fallthru
      _
    %p329 = scmp.lt.s32.totalorder %s18, 3
    // Predicated region
    $region45: #{tpu_custom_call.1} parent=5 // pred_check
      %p330 = pneg %p329
    $region46: #{tpu_custom_call.1} parent=5 // pred_check_branch
      %332 = sbr.rel (%p330) target = $region48
    $region47: #{tpu_custom_call.1} parent=5 // pred_region
      // Predicated region
      $region49: #{tpu_custom_call.1} parent=47 // pred_check
        %p333 = pneg %p38
      $region50: #{tpu_custom_call.1} parent=47 // pred_check_branch
        %335 = sbr.rel (%p333) target = $region52
      $region51: #{tpu_custom_call.1} parent=47 // pred_region
        %p336 = scmp.lt.s32.totalorder %s18, 2
        %s337 = scalar_select %p336, %s18, 2
        %s338 = smul.addr %s337, 8
        %s339 = scalar_lea.vmem %s0, %s338
      $region52: #{tpu_custom_call.1} parent=47 // pred_fallthru
        _
      // Predicated region
      $region53: #{tpu_custom_call.1} parent=47 // pred_check
        %p340 = pneg %p64
      $region54: #{tpu_custom_call.1} parent=47 // pred_check_branch
        %342 = sbr.rel (%p340) target = $region56
      $region55: #{tpu_custom_call.1} parent=47 // pred_region
        %p343 = scmp.lt.s32.totalorder %s18, 2
        %s344 = scalar_select %p343, %s18, 2
        %s345 = smul.addr %s344, 8
        %s346 = scalar_lea.vmem %s1, %s345
      $region56: #{tpu_custom_call.1} parent=47 // pred_fallthru
        _
    $region48: #{tpu_custom_call.1} parent=5 // pred_fallthru
      _
    %p347 = scmp.le.s32.totalorder 1, %s18
    %p348 = scmp.lt.s32.totalorder %s18, 4
    %p349 = pnand %p347, %p348
    %p350 = pneg %p349
    // Predicated region
    $region57: #{tpu_custom_call.1} parent=5 // pred_check
      _
    $region58: #{tpu_custom_call.1} parent=5 // pred_check_branch
      %352 = sbr.rel (%p349) target = $region60
    $region59: #{tpu_custom_call.1} parent=5 // pred_region
      %s353 = ssub.s32 %s18, 1
      %p354 = scmp.lt.s32.totalorder %s23, 2
      %s355 = scalar_select %p354, %s23, 2
      %s356 = smul.addr %s355, 8
      %s357 = scalar_lea.vmem %s0, %s356
      %p358 = pneg %p44
      %p359 = pneg %p41
      %p360 = scmp.lt.s32.totalorder %s23, 2
      %s361 = scalar_select %p360, %s23, 2
      %s362 = smul.addr %s361, 8
      %s363 = scalar_lea.vmem %s1, %s362
      %p364 = pneg %p70
      %p365 = pneg %p67
      %p366 = pneg %p91
      %p367 = pneg %p88
      %p368 = pneg %p112
      %p369 = pneg %p109
      %p370 = pneg %p133
      %p371 = pneg %p130
      %p372 = pneg %p154
      %p373 = pneg %p151
      %p374 = pneg %p175
      %p375 = pneg %p172
      %p376 = pneg %p196
      %p377 = pneg %p193
      %p378 = pneg %p217
      %p379 = pneg %p214
      %p380 = pneg %p238
      %p381 = pneg %p235
      %p382 = pneg %p264
      %p383 = pneg %p261
      %p384 = scmp.lt.s32.totalorder %s23, 2
      %s385 = scalar_select %p384, %s23, 2
      %s386 = smul.addr %s385, 8
      %s387 = scalar_lea.vmem %s10, %s386
      %p388 = pneg %p290
      %p389 = pneg %p287
      %p390 = scmp.lt.s32.totalorder %s23, 2
      %s391 = scalar_select %p390, %s23, 2
      %s392 = smul.addr %s391, 8
      %s393 = scalar_lea.vmem %s11, %s392
      %p394 = scmp.lt.s32.totalorder %s23, 2
      %s395 = scalar_select %p394, %s23, 2
      %s396 = smul.addr %s395, 8
      %s397 = scalar_lea.vmem %s0, %s396
      %p398 = scmp.lt.s32.totalorder %s23, 2
      %s399 = scalar_select %p398, %s23, 2
      %s400 = smul.addr %s399, 8
      %s401 = scalar_lea.vmem %s1, %s400
      %p402 = scmp.lt.s32.totalorder %s23, 2
      %s403 = scalar_select %p402, %s23, 2
      %s404 = smul.addr %s403, 8
      %s405 = scalar_lea.vmem %s10, %s404
      %p406 = scmp.lt.s32.totalorder %s23, 2
      %s407 = scalar_select %p406, %s23, 2
      %s408 = smul.addr %s407, 8
      %s409 = scalar_lea.vmem %s11, %s408
      %v410 = vld [vmem:[%s397] sm:$0xff]
      %v411 = vld [vmem:[%s2] sm:$0xff]
      %v412 = vld [vmem:[%s3] sm:$0x1]
      %v414 = vlaneseq
      %v415 = vshrl.u32 %v414, 7
      %v416 = vsub.s32 0, %v415
      %v417 = vrot.slane %v412, %v416
      %vm419 = vcmask 64512
      %v421 = vsel %vm419, %v410, 0
      %423 = vmatprep.subr.mxu0 0.0
      %424 = vmatpush1.msra.mxu0 %v411
      %425 = vmatprep.subr.mxu0 0.0
      %426 = vmatpush1.msra.mxu0 0.0
      %427 = vmatprep.subr.mxu0 0.0
      %428 = vmatpush1.msra.mxu0 0.0
      %429 = vmatprep.subr.mxu0 0.0
      %430 = vmatpush1.msra.mxu0 0.0
      %431 = vmatprep.subr.mxu0 0.0
      %432 = vmatpush1.msra.mxu0 0.0
      %433 = vmatprep.subr.mxu0 0.0
      %434 = vmatpush1.msra.mxu0 0.0
      %435 = vmatprep.subr.mxu0 0.0
      %436 = vmatpush1.msra.mxu0 0.0
      %437 = vmatprep.subr.mxu0 0.0
      %438 = vmatpush1.msra.mxu0 0.0
      %439 = vmatprep.subr.mxu0 0.0
      %440 = vmatpush1.msra.mxu0 0.0
      %441 = vmatprep.subr.mxu0 0.0
      %442 = vmatpush1.msra.mxu0 0.0
      %443 = vmatprep.subr.mxu0 0.0
      %444 = vmatpush1.msra.mxu0 0.0
      %445 = vmatprep.subr.mxu0 0.0
      %446 = vmatpush1.msra.mxu0 0.0
      %447 = vmatprep.subr.mxu0 0.0
      %448 = vmatpush1.msra.mxu0 0.0
      %449 = vmatprep.subr.mxu0 0.0
      %450 = vmatpush1.msra.mxu0 0.0
      %451 = vmatprep.subr.mxu0 0.0
      %452 = vmatpush1.msra.mxu0 0.0
      %453 = vmatprep.subr.mxu0 0.0
      %454 = vmatpush1.msra.mxu0 0.0
      %455 = vmatprep.subr.mxu0 0.0
      %456 = vmatpush1.msra.mxu0 0.0
      %457 = vmatprep.subr.mxu0 0.0
      %458 = vmatpush1.msra.mxu0 0.0
      %459 = vmatprep.subr.mxu0 0.0
      %460 = vmatpush1.msra.mxu0 0.0
      %461 = vmatprep.subr.mxu0 0.0
      %462 = vmatpush1.msra.mxu0 0.0
      %463 = vmatprep.subr.mxu0 0.0
      %464 = vmatpush1.msra.mxu0 0.0
      %465 = vmatprep.subr.mxu0 0.0
      %466 = vmatpush1.msra.mxu0 0.0
      %467 = vmatprep.subr.mxu0 0.0
      %468 = vmatpush1.msra.mxu0 0.0
      %469 = vmatprep.subr.mxu0 0.0
      %470 = vmatpush1.msra.mxu0 0.0
      %471 = vmatprep.subr.mxu0 0.0
      %472 = vmatpush1.msra.mxu0 0.0
      %473 = vmatprep.subr.mxu0 0.0
      %474 = vmatpush1.msra.mxu0 0.0
      %475 = vmatprep.subr.mxu0 0.0
      %476 = vmatpush1.msra.mxu0 0.0
      %477 = vmatprep.subr.mxu0 0.0
      %478 = vmatpush1.msra.mxu0 0.0
      %479 = vmatprep.subr.mxu0 0.0
      %480 = vmatpush1.msra.mxu0 0.0
      %481 = vmatprep.subr.mxu0 0.0
      %482 = vmatpush1.msra.mxu0 0.0
      %483 = vmatprep.subr.mxu0 0.0
      %484 = vmatpush1.msra.mxu0 0.0
      %485 = vmatprep.subr.mxu0 0.0
      %486 = vmatpush1.msra.mxu0 0.0
      %487 = vmatprep.mubr.f32.mxu0 0.0
      %488 = vmatmul.mubr.f32.gmra.mrb[0].mxu0 %v421
      %v489 = vpop.f32.mrb[0].mxu0
      %v490 = vadd.f32 %v417, %v489
      %v491 = vpop.f32.mrb[0].mxu0
      %492 = vdwg.mxu0
      %v493 = vmax.f32 %v490, 0.0
      %vm494 = vcmask 261120
      %495 = vst.msk [vmem:[#allocation2] sm:$0xff] %vm494, %v493
      %v496 = vld [vmem:[#allocation2] sm:$0xff]
      %v497 = vld [vmem:[%s4] sm:$0xff]
      %v498 = vld [vmem:[%s4 + $0x8] sm:$0xff]
      %v499 = vld [vmem:[%s4 + $0x10] sm:$0xff]
      %v500 = vld [vmem:[%s4 + $0x18] sm:$0xff]
      %v501 = vld [vmem:[%s5] sm:$0x1]
      %v503 = vlaneseq
      %v504 = vshrl.u32 %v503, 7
      %v505 = vsub.s32 0, %v504
      %v506 = vrot.slane %v501, %v505
      %v509 = vsel %vm494, %v496, 0
      %511 = vmatprep.subr.mxu0 0.0
      %512 = vmatpush1.msra.mxu0 %v497
      %513 = vmatprep.subr.mxu0 0.0
      %514 = vmatpush1.msra.mxu0 %v498
      %515 = vmatprep.subr.mxu0 0.0
      %516 = vmatpush1.msra.mxu0 %v499
      %517 = vmatprep.subr.mxu0 0.0
      %518 = vmatpush1.msra.mxu0 %v500
      %519 = vmatprep.subr.mxu0 0.0
      %520 = vmatpush1.msra.mxu0 0.0
      %521 = vmatprep.subr.mxu0 0.0
      %522 = vmatpush1.msra.mxu0 0.0
      %523 = vmatprep.subr.mxu0 0.0
      %524 = vmatpush1.msra.mxu0 0.0
      %525 = vmatprep.subr.mxu0 0.0
      %526 = vmatpush1.msra.mxu0 0.0
      %527 = vmatprep.subr.mxu0 0.0
      %528 = vmatpush1.msra.mxu0 0.0
      %529 = vmatprep.subr.mxu0 0.0
      %530 = vmatpush1.msra.mxu0 0.0
      %531 = vmatprep.subr.mxu0 0.0
      %532 = vmatpush1.msra.mxu0 0.0
      %533 = vmatprep.subr.mxu0 0.0
      %534 = vmatpush1.msra.mxu0 0.0
      %535 = vmatprep.subr.mxu0 0.0
      %536 = vmatpush1.msra.mxu0 0.0
      %537 = vmatprep.subr.mxu0 0.0
      %538 = vmatpush1.msra.mxu0 0.0
      %539 = vmatprep.subr.mxu0 0.0
      %540 = vmatpush1.msra.mxu0 0.0
      %541 = vmatprep.subr.mxu0 0.0
      %542 = vmatpush1.msra.mxu0 0.0
      %543 = vmatprep.subr.mxu0 0.0
      %544 = vmatpush1.msra.mxu0 0.0
      %545 = vmatprep.subr.mxu0 0.0
      %546 = vmatpush1.msra.mxu0 0.0
      %547 = vmatprep.subr.mxu0 0.0
      %548 = vmatpush1.msra.mxu0 0.0
      %549 = vmatprep.subr.mxu0 0.0
      %550 = vmatpush1.msra.mxu0 0.0
      %551 = vmatprep.subr.mxu0 0.0
      %552 = vmatpush1.msra.mxu0 0.0
      %553 = vmatprep.subr.mxu0 0.0
      %554 = vmatpush1.msra.mxu0 0.0
      %555 = vmatprep.subr.mxu0 0.0
      %556 = vmatpush1.msra.mxu0 0.0
      %557 = vmatprep.subr.mxu0 0.0
      %558 = vmatpush1.msra.mxu0 0.0
      %559 = vmatprep.subr.mxu0 0.0
      %560 = vmatpush1.msra.mxu0 0.0
      %561 = vmatprep.subr.mxu0 0.0
      %562 = vmatpush1.msra.mxu0 0.0
      %563 = vmatprep.subr.mxu0 0.0
      %564 = vmatpush1.msra.mxu0 0.0
      %565 = vmatprep.subr.mxu0 0.0
      %566 = vmatpush1.msra.mxu0 0.0
      %567 = vmatprep.subr.mxu0 0.0
      %568 = vmatpush1.msra.mxu0 0.0
      %569 = vmatprep.subr.mxu0 0.0
      %570 = vmatpush1.msra.mxu0 0.0
      %571 = vmatprep.subr.mxu0 0.0
      %572 = vmatpush1.msra.mxu0 0.0
      %573 = vmatprep.subr.mxu0 0.0
      %574 = vmatpush1.msra.mxu0 0.0
      %575 = vmatprep.mubr.f32.mxu0 0.0
      %576 = vmatmul.mubr.f32.gmra.mrb[0].mxu0 %v509
      %v577 = vpop.f32.mrb[0].mxu0
      %v578 = vadd.f32 %v506, %v577
      %v579 = vpop.f32.mrb[0].mxu0
      %580 = vdwg.mxu0
      %v581 = vmax.f32 %v578, 0.0
      %582 = vst.msk [vmem:[#allocation2] sm:$0xff] %vm494, %v581
      %v583 = vld [vmem:[#allocation2] sm:$0xff]
      %v584 = vld [vmem:[%s6] sm:$0xff]
      %v585 = vld [vmem:[%s6 + $0x8] sm:$0xff]
      %v586 = vld [vmem:[%s6 + $0x10] sm:$0xff]
      %v587 = vld [vmem:[%s6 + $0x18] sm:$0xff]
      %v588 = vld [vmem:[%s7] sm:$0x1]
      %v590 = vlaneseq
      %v591 = vshrl.u32 %v590, 7
      %v592 = vsub.s32 0, %v591
      %v593 = vrot.slane %v588, %v592
      %v596 = vsel %vm494, %v583, 0
      %598 = vmatprep.subr.mxu0 0.0
      %599 = vmatpush1.msra.mxu0 %v584
      %600 = vmatprep.subr.mxu0 0.0
      %601 = vmatpush1.msra.mxu0 %v585
      %602 = vmatprep.subr.mxu0 0.0
      %603 = vmatpush1.msra.mxu0 %v586
      %604 = vmatprep.subr.mxu0 0.0
      %605 = vmatpush1.msra.mxu0 %v587
      %606 = vmatprep.subr.mxu0 0.0
      %607 = vmatpush1.msra.mxu0 0.0
      %608 = vmatprep.subr.mxu0 0.0
      %609 = vmatpush1.msra.mxu0 0.0
      %610 = vmatprep.subr.mxu0 0.0
      %611 = vmatpush1.msra.mxu0 0.0
      %612 = vmatprep.subr.mxu0 0.0
      %613 = vmatpush1.msra.mxu0 0.0
      %614 = vmatprep.subr.mxu0 0.0
      %615 = vmatpush1.msra.mxu0 0.0
      %616 = vmatprep.subr.mxu0 0.0
      %617 = vmatpush1.msra.mxu0 0.0
      %618 = vmatprep.subr.mxu0 0.0
      %619 = vmatpush1.msra.mxu0 0.0
      %620 = vmatprep.subr.mxu0 0.0
      %621 = vmatpush1.msra.mxu0 0.0
      %622 = vmatprep.subr.mxu0 0.0
      %623 = vmatpush1.msra.mxu0 0.0
      %624 = vmatprep.subr.mxu0 0.0
      %625 = vmatpush1.msra.mxu0 0.0
      %626 = vmatprep.subr.mxu0 0.0
      %627 = vmatpush1.msra.mxu0 0.0
      %628 = vmatprep.subr.mxu0 0.0
      %629 = vmatpush1.msra.mxu0 0.0
      %630 = vmatprep.subr.mxu0 0.0
      %631 = vmatpush1.msra.mxu0 0.0
      %632 = vmatprep.subr.mxu0 0.0
      %633 = vmatpush1.msra.mxu0 0.0
      %634 = vmatprep.subr.mxu0 0.0
      %635 = vmatpush1.msra.mxu0 0.0
      %636 = vmatprep.subr.mxu0 0.0
      %637 = vmatpush1.msra.mxu0 0.0
      %638 = vmatprep.subr.mxu0 0.0
      %639 = vmatpush1.msra.mxu0 0.0
      %640 = vmatprep.subr.mxu0 0.0
      %641 = vmatpush1.msra.mxu0 0.0
      %642 = vmatprep.subr.mxu0 0.0
      %643 = vmatpush1.msra.mxu0 0.0
      %644 = vmatprep.subr.mxu0 0.0
      %645 = vmatpush1.msra.mxu0 0.0
      %646 = vmatprep.subr.mxu0 0.0
      %647 = vmatpush1.msra.mxu0 0.0
      %648 = vmatprep.subr.mxu0 0.0
      %649 = vmatpush1.msra.mxu0 0.0
      %650 = vmatprep.subr.mxu0 0.0
      %651 = vmatpush1.msra.mxu0 0.0
      %652 = vmatprep.subr.mxu0 0.0
      %653 = vmatpush1.msra.mxu0 0.0
      %654 = vmatprep.subr.mxu0 0.0
      %655 = vmatpush1.msra.mxu0 0.0
      %656 = vmatprep.subr.mxu0 0.0
      %657 = vmatpush1.msra.mxu0 0.0
      %658 = vmatprep.subr.mxu0 0.0
      %659 = vmatpush1.msra.mxu0 0.0
      %660 = vmatprep.subr.mxu0 0.0
      %661 = vmatpush1.msra.mxu0 0.0
      %662 = vmatprep.mubr.f32.mxu0 0.0
      %663 = vmatmul.mubr.f32.gmra.mrb[0].mxu0 %v596
      %v664 = vpop.f32.mrb[0].mxu0
      %v665 = vadd.f32 %v593, %v664
      %v666 = vpop.f32.mrb[0].mxu0
      %667 = vdwg.mxu0
      %v668 = vld [vmem:[%s8] sm:$0xff]
      %v669 = vld [vmem:[%s8 + $0x8] sm:$0xff]
      %v670 = vld [vmem:[%s8 + $0x10] sm:$0xff]
      %v671 = vld [vmem:[%s8 + $0x18] sm:$0xff]
      %v672 = vld [vmem:[%s9] sm:$0x1]
      %v674 = vlaneseq
      %v675 = vshrl.u32 %v674, 7
      %v676 = vsub.s32 0, %v675
      %v677 = vrot.slane %v672, %v676
      %679 = vmatprep.subr.mxu0 0.0
      %680 = vmatpush1.msra.mxu0 %v668
      %681 = vmatprep.subr.mxu0 0.0
      %682 = vmatpush1.msra.mxu0 %v669
      %683 = vmatprep.subr.mxu0 0.0
      %684 = vmatpush1.msra.mxu0 %v670
      %685 = vmatprep.subr.mxu0 0.0
      %686 = vmatpush1.msra.mxu0 %v671
      %687 = vmatprep.subr.mxu0 0.0
      %688 = vmatpush1.msra.mxu0 0.0
      %689 = vmatprep.subr.mxu0 0.0
      %690 = vmatpush1.msra.mxu0 0.0
      %691 = vmatprep.subr.mxu0 0.0
      %692 = vmatpush1.msra.mxu0 0.0
      %693 = vmatprep.subr.mxu0 0.0
      %694 = vmatpush1.msra.mxu0 0.0
      %695 = vmatprep.subr.mxu0 0.0
      %696 = vmatpush1.msra.mxu0 0.0
      %697 = vmatprep.subr.mxu0 0.0
      %698 = vmatpush1.msra.mxu0 0.0
      %699 = vmatprep.subr.mxu0 0.0
      %700 = vmatpush1.msra.mxu0 0.0
      %701 = vmatprep.subr.mxu0 0.0
      %702 = vmatpush1.msra.mxu0 0.0
      %703 = vmatprep.subr.mxu0 0.0
      %704 = vmatpush1.msra.mxu0 0.0
      %705 = vmatprep.subr.mxu0 0.0
      %706 = vmatpush1.msra.mxu0 0.0
      %707 = vmatprep.subr.mxu0 0.0
      %708 = vmatpush1.msra.mxu0 0.0
      %709 = vmatprep.subr.mxu0 0.0
      %710 = vmatpush1.msra.mxu0 0.0
      %711 = vmatprep.subr.mxu0 0.0
      %712 = vmatpush1.msra.mxu0 0.0
      %713 = vmatprep.subr.mxu0 0.0
      %714 = vmatpush1.msra.mxu0 0.0
      %715 = vmatprep.subr.mxu0 0.0
      %716 = vmatpush1.msra.mxu0 0.0
      %717 = vmatprep.subr.mxu0 0.0
      %718 = vmatpush1.msra.mxu0 0.0
      %719 = vmatprep.subr.mxu0 0.0
      %720 = vmatpush1.msra.mxu0 0.0
      %721 = vmatprep.subr.mxu0 0.0
      %722 = vmatpush1.msra.mxu0 0.0
      %723 = vmatprep.subr.mxu0 0.0
      %724 = vmatpush1.msra.mxu0 0.0
      %725 = vmatprep.subr.mxu0 0.0
      %726 = vmatpush1.msra.mxu0 0.0
      %727 = vmatprep.subr.mxu0 0.0
      %728 = vmatpush1.msra.mxu0 0.0
      %729 = vmatprep.subr.mxu0 0.0
      %730 = vmatpush1.msra.mxu0 0.0
      %731 = vmatprep.subr.mxu0 0.0
      %732 = vmatpush1.msra.mxu0 0.0
      %733 = vmatprep.subr.mxu0 0.0
      %734 = vmatpush1.msra.mxu0 0.0
      %735 = vmatprep.subr.mxu0 0.0
      %736 = vmatpush1.msra.mxu0 0.0
      %737 = vmatprep.subr.mxu0 0.0
      %738 = vmatpush1.msra.mxu0 0.0
      %739 = vmatprep.subr.mxu0 0.0
      %740 = vmatpush1.msra.mxu0 0.0
      %741 = vmatprep.subr.mxu0 0.0
      %742 = vmatpush1.msra.mxu0 0.0
      %743 = vmatprep.mubr.f32.mxu0 0.0
      %744 = vmatmul.mubr.f32.gmra.mrb[0].mxu0 %v596
      %v745 = vpop.f32.mrb[0].mxu0
      %v746 = vadd.f32 %v677, %v745
      %v747 = vpop.f32.mrb[0].mxu0
      %748 = vdwg.mxu0
      %v749 = vadd.f32 %v665, 2.0
      %v750 = vxor.u32 %v749, 2147483648
      %v751 = vmul.f32 %v750, 1.442695
      %v752 = vpow.pop %v751
      %v753 = vadd.f32 %v752, 1.0
      %v754 = vrcp.pop %v753
      %v755 = vmul.f32 1.0, %v754
      %v756 = vld [vmem:[%s401] sm:$0xff]
      %v757 = vadd.f32 %v756, %v746
      %v758 = vmul.f32 %v757, %v755
      %759 = vst.msk [vmem:[%s405] sm:$0xff] %vm419, %v758
      %v760 = vmin.f32 %v749, 0.0
      %v761 = vand.u32 2147483647, %v749
      %v762 = vsub.f32 0.0, %v761
      %v763 = vmul.f32 %v762, 1.442695
      %v764 = vpow.pop %v763
      %v765 = vadd.f32 %v764, 1.0
      %v766 = vlog2.pop %v765
      %v767 = vmul.f32 %v766, 0.6931472
      %v768 = vsub.f32 %v760, %v767
      %v769 = vsel %vm419, %v768, 0.0
      %770 = vadd.xlane.f32.xlu0 %v769
      %v771 = vpop.xlane.xlu0 %770
      %vm772 = vcmask 7168
      %773 = vst.msk [vmem:[%s409] sm:$0xff] %vm772, %v771
      %p774 = scmp.lt.s32.totalorder %s23, 2
      %s775 = scalar_select %p774, %s23, 2
      %s776 = smul.addr %s775, 8
      %s777 = scalar_lea.vmem %s10, %s776
      %p778 = scmp.lt.s32.totalorder %s23, 2
      %s779 = scalar_select %p778, %s23, 2
      %s780 = smul.addr %s779, 8
      %s781 = scalar_lea.vmem %s11, %s780
      // Predicated region
      $region61: #{tpu_custom_call.1} parent=59 // pred_check
        %p782 = pneg %p261
      $region62: #{tpu_custom_call.1} parent=59 // pred_check_branch
        %784 = sbr.rel (%p782) target = $region64
      $region63: #{tpu_custom_call.1} parent=59 // pred_region
        _
      $region64: #{tpu_custom_call.1} parent=59 // pred_fallthru
        _
      // Predicated region
      $region65: #{tpu_custom_call.1} parent=59 // pred_check
        %p785 = pneg %p287
      $region66: #{tpu_custom_call.1} parent=59 // pred_check_branch
        %787 = sbr.rel (%p785) target = $region68
      $region67: #{tpu_custom_call.1} parent=59 // pred_region
        _
      $region68: #{tpu_custom_call.1} parent=59 // pred_fallthru
        _
    $region60: #{tpu_custom_call.1} parent=5 // pred_fallthru
      _
    %p788 = scmp.le.s32.totalorder 2, %s18
    // Predicated region
    $region69: #{tpu_custom_call.1} parent=5 // pred_check
      %p789 = pneg %p788
    $region70: #{tpu_custom_call.1} parent=5 // pred_check_branch
      %791 = sbr.rel (%p789) target = $region72
    $region71: #{tpu_custom_call.1} parent=5 // pred_region
      %s792 = ssub.s32 %s18, 2
      // Predicated region
      $region73: #{tpu_custom_call.1} parent=71 // pred_check
        %p793 = pneg %p267
      $region74: #{tpu_custom_call.1} parent=71 // pred_check_branch
        %795 = sbr.rel (%p793) target = $region76
      $region75: #{tpu_custom_call.1} parent=71 // pred_region
        %p796 = scmp.lt.s32.totalorder %s24, 2
        %s797 = scalar_select %p796, %s24, 2
        %s798 = smul.addr %s797, 8
        %s799 = scalar_lea.vmem %s10, %s798
      $region76: #{tpu_custom_call.1} parent=71 // pred_fallthru
        _
      // Predicated region
      $region77: #{tpu_custom_call.1} parent=71 // pred_check
        %p800 = pneg %p293
      $region78: #{tpu_custom_call.1} parent=71 // pred_check_branch
        %802 = sbr.rel (%p800) target = $region80
      $region79: #{tpu_custom_call.1} parent=71 // pred_region
        %p803 = scmp.lt.s32.totalorder %s24, 2
        %s804 = scalar_select %p803, %s24, 2
        %s805 = smul.addr %s804, 8
        %s806 = scalar_lea.vmem %s11, %s805
      $region80: #{tpu_custom_call.1} parent=71 // pred_fallthru
        _
    $region72: #{tpu_custom_call.1} parent=5 // pred_fallthru
      _
  $region6: #{tpu_custom_call.1} parent=0 // loop_footer
    %s22 = sadd.s32 1, %s18
  $region7: #{tpu_custom_call.1} parent=0 // loop_footer_branch
    %17 = sbr.rel target = $region3
  $region8: #{tpu_custom_call.1} parent=0 // loop_exit
    _

</llo_original>
